<compile_context>
chip_gen: v7x
topology: tpu7x:2x2x1
jax: 0.10.0
libtpu: 0.0.40
codegen_flags: <defaults>
</compile_context>

<pallas_src>
import jax
import jax.numpy as jnp
from jax.experimental import pallas as pl
from jax.experimental.pallas import tpu as pltpu


def _qnet_kernel(s_ref, a_ref,
                 w1_ref, b1_ref,
                 w2_ref, b2_ref,
                 wa_ref, ba_ref,
                 w3s_ref, w3a_ref, b3_ref,
                 w4_ref, b4_ref,
                 w5_ref, b5_ref,
                 out_ref):
    f32 = jnp.float32
    bf16 = jnp.bfloat16
    relu = lambda v: jnp.maximum(v, 0.0)

    # State trunk layer 1: Linear(16,256)+ReLU  (MXU, K=16)
    h1 = relu(jnp.dot(s_ref[...].astype(bf16), w1_ref[...],
                      preferred_element_type=f32) + b1_ref[...])      # (TB, 256)

    # State trunk layer 2: Linear(256,256)+ReLU (the dominant, well-shaped matmul)
    h2 = relu(jnp.dot(h1.astype(bf16), w2_ref[...],
                      preferred_element_type=f32) + b2_ref[...])      # (TB, 256)

    # Action branch: Linear(2,64)+ReLU on the VPU (K=2 is degenerate for the MXU).
    act = a_ref[...]                                                  # (TB, 2) f32
    wa = wa_ref[...]                                                  # (2, 64) f32
    a1 = relu(act[:, 0:1] * wa[0:1, :]
              + act[:, 1:2] * wa[1:2, :] + ba_ref[...])               # (TB, 64)

    # Head layer 1 on concat([h2, a1]) expressed as a split matmul (no concat copy).
    h3 = relu(jnp.dot(h2.astype(bf16), w3s_ref[...], preferred_element_type=f32)
              + jnp.dot(a1.astype(bf16), w3a_ref[...], preferred_element_type=f32)
              + b3_ref[...])                                          # (TB, 128)

    # Head layer 2: Linear(128,32)+ReLU
    h4 = relu(jnp.dot(h3.astype(bf16), w4_ref[...],
                      preferred_element_type=f32) + b4_ref[...])      # (TB, 32)

    # Head layer 3: Linear(32,1) as a VPU multiply + lane reduction (avoids N=1 GEMV).
    out_ref[...] = (jnp.sum(h4 * w5_ref[...], axis=-1, keepdims=True)
                    + b5_ref[...]).astype(out_ref.dtype)


def _round_up(n, m):
    return ((n + m - 1) // m) * m


def qnetwork_forward(states, actions, params, *, block_b=1024):
    """states: (B,16) f32, actions: (B,2) f32 -> (B,1) f32."""
    B = states.shape[0]
    TB = int(min(block_b, _round_up(B, 8)))          # sublane-aligned batch tile
    grid = (pl.cdiv(B, TB),)

    weight_keys = ("w1", "b1", "w2", "b2", "wa", "ba",
                   "w3s", "w3a", "b3", "w4", "b4", "w5", "b5")
    weights = [params[k] for k in weight_keys]
    # Weights/biases stay VMEM-resident across grid iterations (constant index_map).
    w_specs = [pl.BlockSpec(w.shape, lambda i: (0, 0)) for w in weights]

    flops = 2 * B * (16 * 256 + 256 * 256 + 2 * 64 + 320 * 128 + 128 * 32 + 32)
    bytes_accessed = (sum(int(w.size) * w.dtype.itemsize for w in weights)
                      + B * (16 + 2) * 4 + B * 4)

    out = pl.pallas_call(
        _qnet_kernel,
        out_shape=jax.ShapeDtypeStruct((B, 1), jnp.float32),
        grid=grid,
        in_specs=[pl.BlockSpec((TB, 16), lambda i: (i, 0)),
                  pl.BlockSpec((TB, 2), lambda i: (i, 0))] + w_specs,
        out_specs=pl.BlockSpec((TB, 1), lambda i: (i, 0)),
        compiler_params=pltpu.CompilerParams(
            dimension_semantics=("parallel",)),
        cost_estimate=pl.CostEstimate(
            flops=flops, transcendentals=0, bytes_accessed=bytes_accessed),
    )(states, actions, *weights)
    return out


def init_params(key):
    # PyTorch nn.Linear default init (initialize_weights_he is only applied to
    # DQNBase, which the cnn=False path never instantiates):
    #   W, b ~ U(-1/sqrt(fan_in), 1/sqrt(fan_in))
    def linear(k, fan_in, fan_out):
        kw, kb = jax.random.split(k)
        bound = 1.0 / (fan_in ** 0.5)
        w = jax.random.uniform(kw, (fan_in, fan_out), jnp.float32, -bound, bound)
        b = jax.random.uniform(kb, (1, fan_out), jnp.float32, -bound, bound)
        return w, b

    k1, k2, ka, k3, k4, k5 = jax.random.split(key, 6)
    w1, b1 = linear(k1, 16, 256)     # conv[0]: Linear(16,256)
    w2, b2 = linear(k2, 256, 256)    # conv[2]: Linear(256,256)
    wa, ba = linear(ka, 2, 64)       # action_trans: Linear(2,64)
    w3, b3 = linear(k3, 320, 128)    # head[0]: Linear(320,128)
    w4, b4 = linear(k4, 128, 32)     # head[2]: Linear(128,32)
    w5, b5 = linear(k5, 32, 1)       # head[4]: Linear(32,1)

    bf16 = jnp.bfloat16
    return {
        "w1": w1.astype(bf16), "b1": b1,
        "w2": w2.astype(bf16), "b2": b2,
        "wa": wa, "ba": ba,                            # f32 (VPU branch, exact)
        "w3s": w3[:256].astype(bf16),                  # head[0] split: state part
        "w3a": w3[256:].astype(bf16),                  # head[0] split: action part
        "b3": b3,
        "w4": w4.astype(bf16), "b4": b4,
        "w5": w5.reshape(1, 32),                       # f32 VPU reduction weights
        "b5": b5,                                      # (1, 1) f32
    }


def _reference_forward(states, actions, p):
    f32 = jnp.float32
    relu = lambda v: jnp.maximum(v, 0.0)
    s = relu(states @ p["w1"].astype(f32) + p["b1"])
    s = relu(s @ p["w2"].astype(f32) + p["b2"])
    a = relu(actions @ p["wa"] + p["ba"])
    x = jnp.concatenate([s, a], axis=1)
    w3 = jnp.concatenate([p["w3s"], p["w3a"]], axis=0).astype(f32)
    h = relu(x @ w3 + p["b3"])
    h = relu(h @ p["w4"].astype(f32) + p["b4"])
    return h @ p["w5"].reshape(32, 1) + p["b5"]


if __name__ == "__main__":
    key = jax.random.PRNGKey(0)
    k_param, k_s, k_a, k_s2, k_a2 = jax.random.split(key, 5)
    params = init_params(k_param)

    # Small single-tile case.
    B = 8
    states = jax.random.normal(k_s, (B, 16), jnp.float32)
    actions = jax.random.normal(k_a, (B, 2), jnp.float32)
    out = jax.block_until_ready(qnetwork_forward(states, actions, params))
    ref = _reference_forward(states, actions, params)
    assert out.shape == (B, 1)
    assert jnp.allclose(out, ref, atol=2e-2, rtol=2e-2), "mismatch vs reference (B=8)"

    # Multi-tile case exercising the batch grid + ragged last tile.
    B2 = 300
    states2 = jax.random.normal(k_s2, (B2, 16), jnp.float32)
    actions2 = jax.random.normal(k_a2, (B2, 2), jnp.float32)
    out2 = jax.block_until_ready(
        qnetwork_forward(states2, actions2, params, block_b=128))
    ref2 = _reference_forward(states2, actions2, params)
    assert out2.shape == (B2, 1)
    assert jnp.allclose(out2, ref2, atol=2e-2, rtol=2e-2), "mismatch vs reference (B=300)"

    print("KERNEL_OK")
</pallas_src>

<mosaic_0001>
module attributes {stable_mosaic.version = 11 : i64} {
  func.func @_qnet_kernel(%arg0: i32, %arg1: memref<8x16xf32, #tpu.memory_space<vmem>>, %arg2: memref<8x2xf32, #tpu.memory_space<vmem>>, %arg3: memref<16x256xbf16, #tpu.memory_space<vmem>>, %arg4: memref<1x256xf32, #tpu.memory_space<vmem>>, %arg5: memref<256x256xbf16, #tpu.memory_space<vmem>>, %arg6: memref<1x256xf32, #tpu.memory_space<vmem>>, %arg7: memref<2x64xf32, #tpu.memory_space<vmem>>, %arg8: memref<1x64xf32, #tpu.memory_space<vmem>>, %arg9: memref<256x128xbf16, #tpu.memory_space<vmem>>, %arg10: memref<64x128xbf16, #tpu.memory_space<vmem>>, %arg11: memref<1x128xf32, #tpu.memory_space<vmem>>, %arg12: memref<128x32xbf16, #tpu.memory_space<vmem>>, %arg13: memref<1x32xf32, #tpu.memory_space<vmem>>, %arg14: memref<1x32xf32, #tpu.memory_space<vmem>>, %arg15: memref<1x1xf32, #tpu.memory_space<vmem>>, %arg16: memref<8x1xf32, #tpu.memory_space<vmem>>) attributes {dimension_semantics = [#tpu.dimension_semantics<parallel>], iteration_bounds = array<i64: 1>, scalar_prefetch = 0 : i64, scratch_operands = 0 : i64, tpu.core_type = #tpu.core_type<tc>, window_params = [{transform_indices = @transform_0, window_bounds = array<i64: 8, 16>}, {transform_indices = @transform_1, window_bounds = array<i64: 8, 2>}, {pipeline_mode = #tpu.pipeline_mode<synchronous>, transform_indices = @transform_2, window_bounds = array<i64: 16, 256>}, {pipeline_mode = #tpu.pipeline_mode<synchronous>, transform_indices = @transform_3, window_bounds = array<i64: 1, 256>}, {pipeline_mode = #tpu.pipeline_mode<synchronous>, transform_indices = @transform_4, window_bounds = array<i64: 256, 256>}, {pipeline_mode = #tpu.pipeline_mode<synchronous>, transform_indices = @transform_5, window_bounds = array<i64: 1, 256>}, {pipeline_mode = #tpu.pipeline_mode<synchronous>, transform_indices = @transform_6, window_bounds = array<i64: 2, 64>}, {pipeline_mode = #tpu.pipeline_mode<synchronous>, transform_indices = @transform_7, window_bounds = array<i64: 1, 64>}, {pipeline_mode = #tpu.pipeline_mode<synchronous>, transform_indices = @transform_8, window_bounds = array<i64: 256, 128>}, {pipeline_mode = #tpu.pipeline_mode<synchronous>, transform_indices = @transform_9, window_bounds = array<i64: 64, 128>}, {pipeline_mode = #tpu.pipeline_mode<synchronous>, transform_indices = @transform_10, window_bounds = array<i64: 1, 128>}, {pipeline_mode = #tpu.pipeline_mode<synchronous>, transform_indices = @transform_11, window_bounds = array<i64: 128, 32>}, {pipeline_mode = #tpu.pipeline_mode<synchronous>, transform_indices = @transform_12, window_bounds = array<i64: 1, 32>}, {pipeline_mode = #tpu.pipeline_mode<synchronous>, transform_indices = @transform_13, window_bounds = array<i64: 1, 32>}, {pipeline_mode = #tpu.pipeline_mode<synchronous>, transform_indices = @transform_14, window_bounds = array<i64: 1, 1>}, {transform_indices = @transform_15, window_bounds = array<i64: 8, 1>}]} {
    %c0 = arith.constant 0 : index
    %c0_0 = arith.constant 0 : index
    %0 = vector.load %arg1[%c0, %c0_0] : memref<8x16xf32, #tpu.memory_space<vmem>>, vector<8x16xf32>
    %1 = arith.truncf %0 : vector<8x16xf32> to vector<8x16xbf16>
    %c0_1 = arith.constant 0 : index
    %c0_2 = arith.constant 0 : index
    %2 = vector.load %arg3[%c0_1, %c0_2] : memref<16x256xbf16, #tpu.memory_space<vmem>>, vector<16x256xbf16>
    %cst = arith.constant dense<0.000000e+00> : vector<8x256xf32>
    %3 = tpu.matmul %1, %2, %cst {dimension_numbers = #tpu.dot_dimension_numbers<[1], [0], [0], [1], [0, 0, 1, 1], [], []>} : vector<8x16xbf16>, vector<16x256xbf16>, vector<8x256xf32> -> vector<8x256xf32>
    %c0_3 = arith.constant 0 : index
    %c0_4 = arith.constant 0 : index
    %4 = vector.load %arg4[%c0_3, %c0_4] : memref<1x256xf32, #tpu.memory_space<vmem>>, vector<1x256xf32>
    %5 = vector.broadcast %4 : vector<1x256xf32> to vector<8x256xf32>
    %6 = arith.addf %3, %5 : vector<8x256xf32>
    %cst_5 = arith.constant 0.000000e+00 : f32
    %7 = vector.broadcast %cst_5 : f32 to vector<8x256xf32>
    %8 = arith.maximumf %6, %7 : vector<8x256xf32>
    %9 = arith.truncf %8 : vector<8x256xf32> to vector<8x256xbf16>
    %c0_6 = arith.constant 0 : index
    %c0_7 = arith.constant 0 : index
    %10 = vector.load %arg5[%c0_6, %c0_7] : memref<256x256xbf16, #tpu.memory_space<vmem>>, vector<256x256xbf16>
    %cst_8 = arith.constant dense<0.000000e+00> : vector<8x256xf32>
    %11 = tpu.matmul %9, %10, %cst_8 {dimension_numbers = #tpu.dot_dimension_numbers<[1], [0], [0], [1], [0, 0, 1, 1], [], []>} : vector<8x256xbf16>, vector<256x256xbf16>, vector<8x256xf32> -> vector<8x256xf32>
    %c0_9 = arith.constant 0 : index
    %c0_10 = arith.constant 0 : index
    %12 = vector.load %arg6[%c0_9, %c0_10] : memref<1x256xf32, #tpu.memory_space<vmem>>, vector<1x256xf32>
    %13 = vector.broadcast %12 : vector<1x256xf32> to vector<8x256xf32>
    %14 = arith.addf %11, %13 : vector<8x256xf32>
    %cst_11 = arith.constant 0.000000e+00 : f32
    %15 = vector.broadcast %cst_11 : f32 to vector<8x256xf32>
    %16 = arith.maximumf %14, %15 : vector<8x256xf32>
    %c0_12 = arith.constant 0 : index
    %c0_13 = arith.constant 0 : index
    %17 = vector.load %arg2[%c0_12, %c0_13] : memref<8x2xf32, #tpu.memory_space<vmem>>, vector<8x2xf32>
    %c0_14 = arith.constant 0 : index
    %c0_15 = arith.constant 0 : index
    %18 = vector.load %arg7[%c0_14, %c0_15] : memref<2x64xf32, #tpu.memory_space<vmem>>, vector<2x64xf32>
    %19 = vector.extract_strided_slice %17 {offsets = [0, 0], sizes = [8, 1], strides = [1, 1]} : vector<8x2xf32> to vector<8x1xf32>
    %20 = vector.extract_strided_slice %18 {offsets = [0, 0], sizes = [1, 64], strides = [1, 1]} : vector<2x64xf32> to vector<1x64xf32>
    %21 = vector.broadcast %19 : vector<8x1xf32> to vector<8x64xf32>
    %22 = vector.broadcast %20 : vector<1x64xf32> to vector<8x64xf32>
    %23 = arith.mulf %21, %22 : vector<8x64xf32>
    %24 = vector.extract_strided_slice %17 {offsets = [0, 1], sizes = [8, 1], strides = [1, 1]} : vector<8x2xf32> to vector<8x1xf32>
    %25 = vector.extract_strided_slice %18 {offsets = [1, 0], sizes = [1, 64], strides = [1, 1]} : vector<2x64xf32> to vector<1x64xf32>
    %26 = vector.broadcast %24 : vector<8x1xf32> to vector<8x64xf32>
    %27 = vector.broadcast %25 : vector<1x64xf32> to vector<8x64xf32>
    %28 = arith.mulf %26, %27 : vector<8x64xf32>
    %29 = arith.addf %23, %28 : vector<8x64xf32>
    %c0_16 = arith.constant 0 : index
    %c0_17 = arith.constant 0 : index
    %30 = vector.load %arg8[%c0_16, %c0_17] : memref<1x64xf32, #tpu.memory_space<vmem>>, vector<1x64xf32>
    %31 = vector.broadcast %30 : vector<1x64xf32> to vector<8x64xf32>
    %32 = arith.addf %29, %31 : vector<8x64xf32>
    %cst_18 = arith.constant 0.000000e+00 : f32
    %33 = vector.broadcast %cst_18 : f32 to vector<8x64xf32>
    %34 = arith.maximumf %32, %33 : vector<8x64xf32>
    %35 = arith.truncf %16 : vector<8x256xf32> to vector<8x256xbf16>
    %c0_19 = arith.constant 0 : index
    %c0_20 = arith.constant 0 : index
    %36 = vector.load %arg9[%c0_19, %c0_20] : memref<256x128xbf16, #tpu.memory_space<vmem>>, vector<256x128xbf16>
    %cst_21 = arith.constant dense<0.000000e+00> : vector<8x128xf32>
    %37 = tpu.matmul %35, %36, %cst_21 {dimension_numbers = #tpu.dot_dimension_numbers<[1], [0], [0], [1], [0, 0, 1, 1], [], []>} : vector<8x256xbf16>, vector<256x128xbf16>, vector<8x128xf32> -> vector<8x128xf32>
    %38 = arith.truncf %34 : vector<8x64xf32> to vector<8x64xbf16>
    %c0_22 = arith.constant 0 : index
    %c0_23 = arith.constant 0 : index
    %39 = vector.load %arg10[%c0_22, %c0_23] : memref<64x128xbf16, #tpu.memory_space<vmem>>, vector<64x128xbf16>
    %cst_24 = arith.constant dense<0.000000e+00> : vector<8x128xf32>
    %40 = tpu.matmul %38, %39, %cst_24 {dimension_numbers = #tpu.dot_dimension_numbers<[1], [0], [0], [1], [0, 0, 1, 1], [], []>} : vector<8x64xbf16>, vector<64x128xbf16>, vector<8x128xf32> -> vector<8x128xf32>
    %41 = arith.addf %37, %40 : vector<8x128xf32>
    %c0_25 = arith.constant 0 : index
    %c0_26 = arith.constant 0 : index
    %42 = vector.load %arg11[%c0_25, %c0_26] : memref<1x128xf32, #tpu.memory_space<vmem>>, vector<1x128xf32>
    %43 = vector.broadcast %42 : vector<1x128xf32> to vector<8x128xf32>
    %44 = arith.addf %41, %43 : vector<8x128xf32>
    %cst_27 = arith.constant 0.000000e+00 : f32
    %45 = vector.broadcast %cst_27 : f32 to vector<8x128xf32>
    %46 = arith.maximumf %44, %45 : vector<8x128xf32>
    %47 = arith.truncf %46 : vector<8x128xf32> to vector<8x128xbf16>
    %c0_28 = arith.constant 0 : index
    %c0_29 = arith.constant 0 : index
    %48 = vector.load %arg12[%c0_28, %c0_29] : memref<128x32xbf16, #tpu.memory_space<vmem>>, vector<128x32xbf16>
    %cst_30 = arith.constant dense<0.000000e+00> : vector<8x32xf32>
    %49 = tpu.matmul %47, %48, %cst_30 {dimension_numbers = #tpu.dot_dimension_numbers<[1], [0], [0], [1], [0, 0, 1, 1], [], []>} : vector<8x128xbf16>, vector<128x32xbf16>, vector<8x32xf32> -> vector<8x32xf32>
    %c0_31 = arith.constant 0 : index
    %c0_32 = arith.constant 0 : index
    %50 = vector.load %arg13[%c0_31, %c0_32] : memref<1x32xf32, #tpu.memory_space<vmem>>, vector<1x32xf32>
    %51 = vector.broadcast %50 : vector<1x32xf32> to vector<8x32xf32>
    %52 = arith.addf %49, %51 : vector<8x32xf32>
    %cst_33 = arith.constant 0.000000e+00 : f32
    %53 = vector.broadcast %cst_33 : f32 to vector<8x32xf32>
    %54 = arith.maximumf %52, %53 : vector<8x32xf32>
    %c0_34 = arith.constant 0 : index
    %c0_35 = arith.constant 0 : index
    %55 = vector.load %arg14[%c0_34, %c0_35] : memref<1x32xf32, #tpu.memory_space<vmem>>, vector<1x32xf32>
    %56 = vector.broadcast %55 : vector<1x32xf32> to vector<8x32xf32>
    %57 = arith.mulf %54, %56 : vector<8x32xf32>
    %cst_36 = arith.constant dense<0.000000e+00> : vector<8xf32>
    %58 = vector.multi_reduction <add>, %57, %cst_36 [1] : vector<8x32xf32> to vector<8xf32>
    %59 = vector.shape_cast %58 : vector<8xf32> to vector<8x1xf32>
    %c0_37 = arith.constant 0 : index
    %c0_38 = arith.constant 0 : index
    %60 = vector.load %arg15[%c0_37, %c0_38] : memref<1x1xf32, #tpu.memory_space<vmem>>, vector<1x1xf32>
    %61 = vector.broadcast %60 : vector<1x1xf32> to vector<8x1xf32>
    %62 = arith.addf %59, %61 : vector<8x1xf32>
    %c0_39 = arith.constant 0 : index
    %c0_40 = arith.constant 0 : index
    %63 = vector.load %arg16[%c0_39, %c0_40] : memref<8x1xf32, #tpu.memory_space<vmem>>, vector<8x1xf32>
    tpu.vector_store %arg16[%c0_39, %c0_40], %62 {strides = array<i32>} : memref<8x1xf32, #tpu.memory_space<vmem>>, vector<8x1xf32>,
    return
  }
  func.func @transform_0(%arg0: i32) -> (i32, i32) {
    %c0_i32 = arith.constant 0 : i32
    %c0_i32_0 = arith.constant 0 : i32
    return %arg0, %c0_i32 : i32, i32
  }
  func.func @transform_1(%arg0: i32) -> (i32, i32) {
    %c0_i32 = arith.constant 0 : i32
    %c0_i32_0 = arith.constant 0 : i32
    return %arg0, %c0_i32 : i32, i32
  }
  func.func @transform_2(%arg0: i32) -> (i32, i32) {
    %c0_i32 = arith.constant 0 : i32
    %c0_i32_0 = arith.constant 0 : i32
    %c0_i32_1 = arith.constant 0 : i32
    return %c0_i32, %c0_i32_0 : i32, i32
  }
  func.func @transform_3(%arg0: i32) -> (i32, i32) {
    %c0_i32 = arith.constant 0 : i32
    %c0_i32_0 = arith.constant 0 : i32
    %c0_i32_1 = arith.constant 0 : i32
    return %c0_i32, %c0_i32_0 : i32, i32
  }
  func.func @transform_4(%arg0: i32) -> (i32, i32) {
    %c0_i32 = arith.constant 0 : i32
    %c0_i32_0 = arith.constant 0 : i32
    %c0_i32_1 = arith.constant 0 : i32
    return %c0_i32, %c0_i32_0 : i32, i32
  }
  func.func @transform_5(%arg0: i32) -> (i32, i32) {
    %c0_i32 = arith.constant 0 : i32
    %c0_i32_0 = arith.constant 0 : i32
    %c0_i32_1 = arith.constant 0 : i32
    return %c0_i32, %c0_i32_0 : i32, i32
  }
  func.func @transform_6(%arg0: i32) -> (i32, i32) {
    %c0_i32 = arith.constant 0 : i32
    %c0_i32_0 = arith.constant 0 : i32
    %c0_i32_1 = arith.constant 0 : i32
    return %c0_i32, %c0_i32_0 : i32, i32
  }
  func.func @transform_7(%arg0: i32) -> (i32, i32) {
    %c0_i32 = arith.constant 0 : i32
    %c0_i32_0 = arith.constant 0 : i32
    %c0_i32_1 = arith.constant 0 : i32
    return %c0_i32, %c0_i32_0 : i32, i32
  }
  func.func @transform_8(%arg0: i32) -> (i32, i32) {
    %c0_i32 = arith.constant 0 : i32
    %c0_i32_0 = arith.constant 0 : i32
    %c0_i32_1 = arith.constant 0 : i32
    return %c0_i32, %c0_i32_0 : i32, i32
  }
  func.func @transform_9(%arg0: i32) -> (i32, i32) {
    %c0_i32 = arith.constant 0 : i32
    %c0_i32_0 = arith.constant 0 : i32
    %c0_i32_1 = arith.constant 0 : i32
    return %c0_i32, %c0_i32_0 : i32, i32
  }
  func.func @transform_10(%arg0: i32) -> (i32, i32) {
    %c0_i32 = arith.constant 0 : i32
    %c0_i32_0 = arith.constant 0 : i32
    %c0_i32_1 = arith.constant 0 : i32
    return %c0_i32, %c0_i32_0 : i32, i32
  }
  func.func @transform_11(%arg0: i32) -> (i32, i32) {
    %c0_i32 = arith.constant 0 : i32
    %c0_i32_0 = arith.constant 0 : i32
    %c0_i32_1 = arith.constant 0 : i32
    return %c0_i32, %c0_i32_0 : i32, i32
  }
  func.func @transform_12(%arg0: i32) -> (i32, i32) {
    %c0_i32 = arith.constant 0 : i32
    %c0_i32_0 = arith.constant 0 : i32
    %c0_i32_1 = arith.constant 0 : i32
    return %c0_i32, %c0_i32_0 : i32, i32
  }
  func.func @transform_13(%arg0: i32) -> (i32, i32) {
    %c0_i32 = arith.constant 0 : i32
    %c0_i32_0 = arith.constant 0 : i32
    %c0_i32_1 = arith.constant 0 : i32
    return %c0_i32, %c0_i32_0 : i32, i32
  }
  func.func @transform_14(%arg0: i32) -> (i32, i32) {
    %c0_i32 = arith.constant 0 : i32
    %c0_i32_0 = arith.constant 0 : i32
    %c0_i32_1 = arith.constant 0 : i32
    return %c0_i32, %c0_i32_0 : i32, i32
  }
  func.func @transform_15(%arg0: i32) -> (i32, i32) {
    %c0_i32 = arith.constant 0 : i32
    %c0_i32_0 = arith.constant 0 : i32
    return %arg0, %c0_i32 : i32, i32
  }
}

</mosaic_0001>

<llo_original>
// kernel: tpu_custom_call.1
$region0: #{tpu_custom_call.1}
  #allocation0 [shape = 'u32[]', space=smem, size = 0x4, offset = 0x4, fixed_abs, tag = 'smem constant byte address 0x4 - core index']
  #allocation1 [shape = 'u32[144,128]{1,0:T(1,128)}', space=vmem, size = 0x12000, scoped, tag = 'internal scratch']
  #allocation2 [shape = 'f32[1,1]{1,0:T(1,128)S(1)}', space=vmem, size = 0x200, scoped, tag = 'scoped memory for tpu_custom_call.1']
  %s0 = inlined_call_operand.vmem [shape: f32[8,16], index: 0, kind: input, shape index: {}]
  %s1 = inlined_call_operand.vmem [shape: f32[8,2], index: 1, kind: input, shape index: {}]
  %s2 = inlined_call_operand.vmem [shape: bf16[16,256], index: 2, kind: input, shape index: {}]
  %s3 = inlined_call_operand.vmem [shape: f32[1,256], index: 3, kind: input, shape index: {}]
  %s4 = inlined_call_operand.hbm [shape: bf16[256,256], index: 4, kind: input, shape index: {}]
  %s5 = inlined_call_operand.vmem [shape: f32[1,256], index: 5, kind: input, shape index: {}]
  %s6 = inlined_call_operand.vmem [shape: f32[2,64], index: 6, kind: input, shape index: {}]
  %s7 = inlined_call_operand.vmem [shape: f32[1,64], index: 7, kind: input, shape index: {}]
  %s8 = inlined_call_operand.hbm [shape: bf16[256,128], index: 8, kind: input, shape index: {}]
  %s9 = inlined_call_operand.vmem [shape: bf16[64,128], index: 9, kind: input, shape index: {}]
  %s10 = inlined_call_operand.vmem [shape: f32[1,128], index: 10, kind: input, shape index: {}]
  %s11 = inlined_call_operand.vmem [shape: bf16[128,32], index: 11, kind: input, shape index: {}]
  %s12 = inlined_call_operand.vmem [shape: f32[1,32], index: 12, kind: input, shape index: {}]
  %s13 = inlined_call_operand.vmem [shape: f32[1,32], index: 13, kind: input, shape index: {}]
  %s14 = inlined_call_operand.<no memory space> [shape: f32[1,1], index: 14, kind: input, shape index: {}]
  %s15 = inlined_call_operand.vmem [shape: f32[8,1], index: 15, kind: output, shape index: {}]
  %s16 = sld [smem:[#allocation0]]
  $region78: #{tpu_custom_call.1} parent=0
    _
  %s18 = ssub.s32 1, %s16
  %s19 = scalar_select 0, %s18, %s16
  %v20 = vstv %s14
  %21 = vst [vmem:[#allocation2] sm:$0x1] %v20
  $region1: #{tpu_custom_call.1} parent=0
    #allocation3 [shape = 'u8[131072]{0}', space=vmem, size = 0x20000, scoped, tag = 'input window, operand 4, single buffered']
    #allocation4 [shape = 's32[1]{0}', space=sflag, size = 0x4, scoped, tag = 'scoped memory for tpu_custom_call.1']
    #allocation5 [shape = 'u8[65536]{0}', space=vmem, size = 0x10000, scoped, tag = 'input window, operand 8, single buffered']
    #allocation6 [shape = 's32[1]{0}', space=sflag, size = 0x4, scoped, tag = 'scoped memory for tpu_custom_call.1']
    %22 = vsyncpa [#allocation4], 0
    %23 = vsyncpa [#allocation6], 0
    // Predicated region
    $region2: #{tpu_custom_call.1} parent=1 // pred_check
      _
    $region3: #{tpu_custom_call.1} parent=1 // pred_check_branch
      %25 = sbr.rel (0) target = $region5
    $region4: #{tpu_custom_call.1} parent=1 // pred_region
      _
    $region5: #{tpu_custom_call.1} parent=1 // pred_fallthru
      _
    // Predicated region
    $region6: #{tpu_custom_call.1} parent=1 // pred_check
      _
    $region7: #{tpu_custom_call.1} parent=1 // pred_check_branch
      %27 = sbr.rel (0) target = $region9
    $region8: #{tpu_custom_call.1} parent=1 // pred_region
      _
    $region9: #{tpu_custom_call.1} parent=1 // pred_fallthru
      _
    // Predicated region
    $region10: #{tpu_custom_call.1} parent=1 // pred_check
      _
    $region11: #{tpu_custom_call.1} parent=1 // pred_check_branch
      %29 = sbr.rel (0) target = $region13
    $region12: #{tpu_custom_call.1} parent=1 // pred_region
      _
    $region13: #{tpu_custom_call.1} parent=1 // pred_fallthru
      _
    // Predicated region
    $region14: #{tpu_custom_call.1} parent=1 // pred_check
      _
    $region15: #{tpu_custom_call.1} parent=1 // pred_check_branch
      %31 = sbr.rel (0) target = $region17
    $region16: #{tpu_custom_call.1} parent=1 // pred_region
      _
    $region17: #{tpu_custom_call.1} parent=1 // pred_fallthru
      _
    // Predicated region
    $region18: #{tpu_custom_call.1} parent=1 // pred_check
      _
    $region19: #{tpu_custom_call.1} parent=1 // pred_check_branch
      %33 = sbr.rel (0) target = $region21
    $region20: #{tpu_custom_call.1} parent=1 // pred_region
      %s35 = ssub.s32 4096, 4096
      %36 = vsyncadd [#allocation4], %s35
      %s37 = sshll.u32 [#allocation3], 4
      %s38 = int_to_ptr.vmem [resolvable:$true] %s37
      %43 = dma.hbm_to_vmem [thread:$0]  %s4, 4096, %s38, [#allocation4], 128, 128, 8
    $region21: #{tpu_custom_call.1} parent=1 // pred_fallthru
      _
    // Predicated region
    $region22: #{tpu_custom_call.1} parent=1 // pred_check
      _
    $region23: #{tpu_custom_call.1} parent=1 // pred_check_branch
      %45 = sbr.rel (0) target = $region25
    $region24: #{tpu_custom_call.1} parent=1 // pred_region
      _
    $region25: #{tpu_custom_call.1} parent=1 // pred_fallthru
      _
    // Predicated region
    $region26: #{tpu_custom_call.1} parent=1 // pred_check
      _
    $region27: #{tpu_custom_call.1} parent=1 // pred_check_branch
      %47 = sbr.rel (0) target = $region29
    $region28: #{tpu_custom_call.1} parent=1 // pred_region
      _
    $region29: #{tpu_custom_call.1} parent=1 // pred_fallthru
      _
    // Predicated region
    $region30: #{tpu_custom_call.1} parent=1 // pred_check
      _
    $region31: #{tpu_custom_call.1} parent=1 // pred_check_branch
      %49 = sbr.rel (0) target = $region33
    $region32: #{tpu_custom_call.1} parent=1 // pred_region
      _
    $region33: #{tpu_custom_call.1} parent=1 // pred_fallthru
      _
    // Predicated region
    $region34: #{tpu_custom_call.1} parent=1 // pred_check
      _
    $region35: #{tpu_custom_call.1} parent=1 // pred_check_branch
      %51 = sbr.rel (0) target = $region37
    $region36: #{tpu_custom_call.1} parent=1 // pred_region
      %s53 = ssub.s32 2048, 2048
      %54 = vsyncadd [#allocation6], %s53
      %s55 = sshll.u32 [#allocation5], 4
      %s56 = int_to_ptr.vmem [resolvable:$true] %s55
      %61 = dma.hbm_to_vmem [thread:$0]  %s8, 2048, %s56, [#allocation6], 64, 64, 4
    $region37: #{tpu_custom_call.1} parent=1 // pred_fallthru
      _
    // Predicated region
    $region38: #{tpu_custom_call.1} parent=1 // pred_check
      _
    $region39: #{tpu_custom_call.1} parent=1 // pred_check_branch
      %63 = sbr.rel (0) target = $region41
    $region40: #{tpu_custom_call.1} parent=1 // pred_region
      _
    $region41: #{tpu_custom_call.1} parent=1 // pred_fallthru
      _
    // Predicated region
    $region42: #{tpu_custom_call.1} parent=1 // pred_check
      _
    $region43: #{tpu_custom_call.1} parent=1 // pred_check_branch
      %65 = sbr.rel (0) target = $region45
    $region44: #{tpu_custom_call.1} parent=1 // pred_region
      _
    $region45: #{tpu_custom_call.1} parent=1 // pred_fallthru
      _
    // Predicated region
    $region46: #{tpu_custom_call.1} parent=1 // pred_check
      _
    $region47: #{tpu_custom_call.1} parent=1 // pred_check_branch
      %67 = sbr.rel (0) target = $region49
    $region48: #{tpu_custom_call.1} parent=1 // pred_region
      _
    $region49: #{tpu_custom_call.1} parent=1 // pred_fallthru
      _
    // Predicated region
    $region50: #{tpu_custom_call.1} parent=1 // pred_check
      _
    $region51: #{tpu_custom_call.1} parent=1 // pred_check_branch
      %69 = sbr.rel (0) target = $region53
    $region52: #{tpu_custom_call.1} parent=1 // pred_region
      _
    $region53: #{tpu_custom_call.1} parent=1 // pred_fallthru
      _
    // Predicated region
    $region54: #{tpu_custom_call.1} parent=1 // pred_check
      _
    $region55: #{tpu_custom_call.1} parent=1 // pred_check_branch
      %71 = sbr.rel (0) target = $region57
    $region56: #{tpu_custom_call.1} parent=1 // pred_region
      _
    $region57: #{tpu_custom_call.1} parent=1 // pred_fallthru
      _
    // Predicated region
    $region58: #{tpu_custom_call.1} parent=1 // pred_check
      _
    $region59: #{tpu_custom_call.1} parent=1 // pred_check_branch
      %73 = sbr.rel (0) target = $region61
    $region60: #{tpu_custom_call.1} parent=1 // pred_region
      _
    $region61: #{tpu_custom_call.1} parent=1 // pred_fallthru
      _
    // Predicated region
    $region62: #{tpu_custom_call.1} parent=1 // pred_check
      _
    $region63: #{tpu_custom_call.1} parent=1 // pred_check_branch
      %75 = sbr.rel (0) target = $region65
    $region64: #{tpu_custom_call.1} parent=1 // pred_region
      %76 = dma.done [#allocation4], 4096
    $region65: #{tpu_custom_call.1} parent=1 // pred_fallthru
      _
    // Predicated region
    $region66: #{tpu_custom_call.1} parent=1 // pred_check
      _
    $region67: #{tpu_custom_call.1} parent=1 // pred_check_branch
      %78 = sbr.rel (0) target = $region69
    $region68: #{tpu_custom_call.1} parent=1 // pred_region
      %79 = dma.done [#allocation6], 2048
    $region69: #{tpu_custom_call.1} parent=1 // pred_fallthru
      _
    %v81 = vld [vmem:[%s0] sm:$0xff]
    %v82 = vpack.c.bf16 %v81, %v81
    %v83 = vld [vmem:[%s2] sm:$0xff]
    %v84 = vld [vmem:[%s2 + $0x8] sm:$0xff]
    %v85 = vld [vmem:[%s3] sm:$0x3]
    %v87 = vlaneseq
    %v88 = vshrl.u32 %v87, 7
    %v89 = vsub.s32 0, %v88
    %v90 = vrot.slane %v85, %v89
    %v91 = vlaneseq
    %v92 = vshrl.u32 %v91, 7
    %v93 = vsub.s32 1, %v92
    %v94 = vrot.slane %v85, %v93
    %v99 = vunpack.c.l.b16 %v83
    %v100 = vunpack.c.h.b16 %v83
    %v101 = vunpack.c.l.b16 %v84
    %v102 = vunpack.c.h.b16 %v84
    %v103 = vpack.c.b16 %v101, %v99
    %v104 = vpack.c.b16 %v102, %v100
    %vm107 = vcmask 130048
    %v109 = vsel %vm107, %v82, 0
    %111 = vmatprep.subr.bf16.mxu0 %v104
    %112 = vmatpush1.bf16.msra.mxu0 %v103
    %113 = vmatprep.subr.bf16.mxu0 0
    %114 = vmatpush1.bf16.msra.mxu0 0
    %115 = vmatprep.subr.bf16.mxu0 0
    %116 = vmatpush1.bf16.msra.mxu0 0
    %117 = vmatprep.subr.bf16.mxu0 0
    %118 = vmatpush1.bf16.msra.mxu0 0
    %119 = vmatprep.subr.bf16.mxu0 0
    %120 = vmatpush1.bf16.msra.mxu0 0
    %121 = vmatprep.subr.bf16.mxu0 0
    %122 = vmatpush1.bf16.msra.mxu0 0
    %123 = vmatprep.subr.bf16.mxu0 0
    %124 = vmatpush1.bf16.msra.mxu0 0
    %125 = vmatprep.subr.bf16.mxu0 0
    %126 = vmatpush1.bf16.msra.mxu0 0
    %127 = vmatprep.subr.bf16.mxu0 0
    %128 = vmatpush1.bf16.msra.mxu0 0
    %129 = vmatprep.subr.bf16.mxu0 0
    %130 = vmatpush1.bf16.msra.mxu0 0
    %131 = vmatprep.subr.bf16.mxu0 0
    %132 = vmatpush1.bf16.msra.mxu0 0
    %133 = vmatprep.subr.bf16.mxu0 0
    %134 = vmatpush1.bf16.msra.mxu0 0
    %135 = vmatprep.subr.bf16.mxu0 0
    %136 = vmatpush1.bf16.msra.mxu0 0
    %137 = vmatprep.subr.bf16.mxu0 0
    %138 = vmatpush1.bf16.msra.mxu0 0
    %139 = vmatprep.subr.bf16.mxu0 0
    %140 = vmatpush1.bf16.msra.mxu0 0
    %141 = vmatprep.subr.bf16.mxu0 0
    %142 = vmatpush1.bf16.msra.mxu0 0
    %143 = vmatprep.mubr.bf16.mxu0 0
    %144 = vmatmul.mubr.bf16.gmra.mrb[0].mxu0 %v109
    %v145 = vpop.f32.mrb[0].mxu0
    %v146 = vadd.f32 %v90, %v145
    %v147 = vpop.f32.mrb[0].mxu0
    %v148 = vadd.f32 %v94, %v147
    %v149 = vpop.f32.mrb[0].mxu0
    %v150 = vpop.f32.mrb[0].mxu0
    %151 = vdwg.mxu0
    %v152 = vmax.f32 %v146, 0.0
    %v153 = vmax.f32 %v148, 0.0
    %v154 = vpack.c.bf16 %v152, %v152
    %v155 = vpack.c.bf16 %v153, %v153
    %v156 = vld [vmem:[#allocation3] sm:$0xff]
    %v157 = vld [vmem:[#allocation3 + $0x8] sm:$0xff]
    %v158 = vld [vmem:[#allocation3 + $0x10] sm:$0xff]
    %v159 = vld [vmem:[#allocation3 + $0x18] sm:$0xff]
    %v160 = vld [vmem:[#allocation3 + $0x20] sm:$0xff]
    %v161 = vld [vmem:[#allocation3 + $0x28] sm:$0xff]
    %v162 = vld [vmem:[#allocation3 + $0x30] sm:$0xff]
    %v163 = vld [vmem:[#allocation3 + $0x38] sm:$0xff]
    %v164 = vld [vmem:[#allocation3 + $0x40] sm:$0xff]
    %v165 = vld [vmem:[#allocation3 + $0x48] sm:$0xff]
    %v166 = vld [vmem:[#allocation3 + $0x50] sm:$0xff]
    %v167 = vld [vmem:[#allocation3 + $0x58] sm:$0xff]
    %v168 = vld [vmem:[#allocation3 + $0x60] sm:$0xff]
    %v169 = vld [vmem:[#allocation3 + $0x68] sm:$0xff]
    %v170 = vld [vmem:[#allocation3 + $0x70] sm:$0xff]
    %v171 = vld [vmem:[#allocation3 + $0x78] sm:$0xff]
    %v172 = vld [vmem:[#allocation3 + $0x80] sm:$0xff]
    %v173 = vld [vmem:[#allocation3 + $0x88] sm:$0xff]
    %v174 = vld [vmem:[#allocation3 + $0x90] sm:$0xff]
    %v175 = vld [vmem:[#allocation3 + $0x98] sm:$0xff]
    %v176 = vld [vmem:[#allocation3 + $0xa0] sm:$0xff]
    %v177 = vld [vmem:[#allocation3 + $0xa8] sm:$0xff]
    %v178 = vld [vmem:[#allocation3 + $0xb0] sm:$0xff]
    %v179 = vld [vmem:[#allocation3 + $0xb8] sm:$0xff]
    %v180 = vld [vmem:[#allocation3 + $0xc0] sm:$0xff]
    %v181 = vld [vmem:[#allocation3 + $0xc8] sm:$0xff]
    %v182 = vld [vmem:[#allocation3 + $0xd0] sm:$0xff]
    %v183 = vld [vmem:[#allocation3 + $0xd8] sm:$0xff]
    %v184 = vld [vmem:[#allocation3 + $0xe0] sm:$0xff]
    %v185 = vld [vmem:[#allocation3 + $0xe8] sm:$0xff]
    %v186 = vld [vmem:[#allocation3 + $0xf0] sm:$0xff]
    %v187 = vld [vmem:[#allocation3 + $0xf8] sm:$0xff]
    %v188 = vld [vmem:[%s5] sm:$0x3]
    %v190 = vlaneseq
    %v191 = vshrl.u32 %v190, 7
    %v192 = vsub.s32 0, %v191
    %v193 = vrot.slane %v188, %v192
    %v194 = vlaneseq
    %v195 = vshrl.u32 %v194, 7
    %v196 = vsub.s32 1, %v195
    %v197 = vrot.slane %v188, %v196
    %v232 = vunpack.c.l.b16 %v156
    %v233 = vunpack.c.h.b16 %v156
    %v234 = vunpack.c.l.b16 %v157
    %v235 = vunpack.c.h.b16 %v157
    %v236 = vunpack.c.l.b16 %v158
    %v237 = vunpack.c.h.b16 %v158
    %v238 = vunpack.c.l.b16 %v159
    %v239 = vunpack.c.h.b16 %v159
    %v240 = vunpack.c.l.b16 %v160
    %v241 = vunpack.c.h.b16 %v160
    %v242 = vunpack.c.l.b16 %v161
    %v243 = vunpack.c.h.b16 %v161
    %v244 = vunpack.c.l.b16 %v162
    %v245 = vunpack.c.h.b16 %v162
    %v246 = vunpack.c.l.b16 %v163
    %v247 = vunpack.c.h.b16 %v163
    %v248 = vunpack.c.l.b16 %v164
    %v249 = vunpack.c.h.b16 %v164
    %v250 = vunpack.c.l.b16 %v165
    %v251 = vunpack.c.h.b16 %v165
    %v252 = vunpack.c.l.b16 %v166
    %v253 = vunpack.c.h.b16 %v166
    %v254 = vunpack.c.l.b16 %v167
    %v255 = vunpack.c.h.b16 %v167
    %v256 = vunpack.c.l.b16 %v168
    %v257 = vunpack.c.h.b16 %v168
    %v258 = vunpack.c.l.b16 %v169
    %v259 = vunpack.c.h.b16 %v169
    %v260 = vunpack.c.l.b16 %v170
    %v261 = vunpack.c.h.b16 %v170
    %v262 = vunpack.c.l.b16 %v171
    %v263 = vunpack.c.h.b16 %v171
    %v264 = vunpack.c.l.b16 %v172
    %v265 = vunpack.c.h.b16 %v172
    %v266 = vunpack.c.l.b16 %v173
    %v267 = vunpack.c.h.b16 %v173
    %v268 = vunpack.c.l.b16 %v174
    %v269 = vunpack.c.h.b16 %v174
    %v270 = vunpack.c.l.b16 %v175
    %v271 = vunpack.c.h.b16 %v175
    %v272 = vunpack.c.l.b16 %v176
    %v273 = vunpack.c.h.b16 %v176
    %v274 = vunpack.c.l.b16 %v177
    %v275 = vunpack.c.h.b16 %v177
    %v276 = vunpack.c.l.b16 %v178
    %v277 = vunpack.c.h.b16 %v178
    %v278 = vunpack.c.l.b16 %v179
    %v279 = vunpack.c.h.b16 %v179
    %v280 = vunpack.c.l.b16 %v180
    %v281 = vunpack.c.h.b16 %v180
    %v282 = vunpack.c.l.b16 %v181
    %v283 = vunpack.c.h.b16 %v181
    %v284 = vunpack.c.l.b16 %v182
    %v285 = vunpack.c.h.b16 %v182
    %v286 = vunpack.c.l.b16 %v183
    %v287 = vunpack.c.h.b16 %v183
    %v288 = vunpack.c.l.b16 %v184
    %v289 = vunpack.c.h.b16 %v184
    %v290 = vunpack.c.l.b16 %v185
    %v291 = vunpack.c.h.b16 %v185
    %v292 = vunpack.c.l.b16 %v186
    %v293 = vunpack.c.h.b16 %v186
    %v294 = vunpack.c.l.b16 %v187
    %v295 = vunpack.c.h.b16 %v187
    %v296 = vpack.c.b16 %v234, %v232
    %v297 = vpack.c.b16 %v235, %v233
    %v298 = vpack.c.b16 %v238, %v236
    %v299 = vpack.c.b16 %v239, %v237
    %v300 = vpack.c.b16 %v242, %v240
    %v301 = vpack.c.b16 %v243, %v241
    %v302 = vpack.c.b16 %v246, %v244
    %v303 = vpack.c.b16 %v247, %v245
    %v304 = vpack.c.b16 %v250, %v248
    %v305 = vpack.c.b16 %v251, %v249
    %v306 = vpack.c.b16 %v254, %v252
    %v307 = vpack.c.b16 %v255, %v253
    %v308 = vpack.c.b16 %v258, %v256
    %v309 = vpack.c.b16 %v259, %v257
    %v310 = vpack.c.b16 %v262, %v260
    %v311 = vpack.c.b16 %v263, %v261
    %v312 = vpack.c.b16 %v266, %v264
    %v313 = vpack.c.b16 %v267, %v265
    %v314 = vpack.c.b16 %v270, %v268
    %v315 = vpack.c.b16 %v271, %v269
    %v316 = vpack.c.b16 %v274, %v272
    %v317 = vpack.c.b16 %v275, %v273
    %v318 = vpack.c.b16 %v278, %v276
    %v319 = vpack.c.b16 %v279, %v277
    %v320 = vpack.c.b16 %v282, %v280
    %v321 = vpack.c.b16 %v283, %v281
    %v322 = vpack.c.b16 %v286, %v284
    %v323 = vpack.c.b16 %v287, %v285
    %v324 = vpack.c.b16 %v290, %v288
    %v325 = vpack.c.b16 %v291, %v289
    %v326 = vpack.c.b16 %v294, %v292
    %v327 = vpack.c.b16 %v295, %v293
    %360 = vmatprep.subr.bf16.mxu0 %v297
    %361 = vmatpush1.bf16.msra.mxu0 %v296
    %362 = vmatprep.subr.bf16.mxu0 %v299
    %363 = vmatpush1.bf16.msra.mxu0 %v298
    %364 = vmatprep.subr.bf16.mxu0 %v301
    %365 = vmatpush1.bf16.msra.mxu0 %v300
    %366 = vmatprep.subr.bf16.mxu0 %v303
    %367 = vmatpush1.bf16.msra.mxu0 %v302
    %368 = vmatprep.subr.bf16.mxu0 %v305
    %369 = vmatpush1.bf16.msra.mxu0 %v304
    %370 = vmatprep.subr.bf16.mxu0 %v307
    %371 = vmatpush1.bf16.msra.mxu0 %v306
    %372 = vmatprep.subr.bf16.mxu0 %v309
    %373 = vmatpush1.bf16.msra.mxu0 %v308
    %374 = vmatprep.subr.bf16.mxu0 %v311
    %375 = vmatpush1.bf16.msra.mxu0 %v310
    %376 = vmatprep.subr.bf16.mxu0 %v313
    %377 = vmatpush1.bf16.msra.mxu0 %v312
    %378 = vmatprep.subr.bf16.mxu0 %v315
    %379 = vmatpush1.bf16.msra.mxu0 %v314
    %380 = vmatprep.subr.bf16.mxu0 %v317
    %381 = vmatpush1.bf16.msra.mxu0 %v316
    %382 = vmatprep.subr.bf16.mxu0 %v319
    %383 = vmatpush1.bf16.msra.mxu0 %v318
    %384 = vmatprep.subr.bf16.mxu0 %v321
    %385 = vmatpush1.bf16.msra.mxu0 %v320
    %386 = vmatprep.subr.bf16.mxu0 %v323
    %387 = vmatpush1.bf16.msra.mxu0 %v322
    %388 = vmatprep.subr.bf16.mxu0 %v325
    %389 = vmatpush1.bf16.msra.mxu0 %v324
    %390 = vmatprep.subr.bf16.mxu0 %v327
    %391 = vmatpush1.bf16.msra.mxu0 %v326
    %392 = vmatprep.mubr.bf16.mxu0 %v155
    %393 = vmatmul.mubr.bf16.gmra.mrb[0].mxu0 %v154
    %v394 = vpop.f32.mrb[0].mxu0
    %v395 = vadd.f32 %v193, %v394
    %v396 = vpop.f32.mrb[0].mxu0
    %v397 = vadd.f32 %v197, %v396
    %v398 = vpop.f32.mrb[0].mxu0
    %v399 = vpop.f32.mrb[0].mxu0
    %400 = vdwg.mxu0
    %v401 = vmax.f32 %v395, 0.0
    %v402 = vmax.f32 %v397, 0.0
    %v403 = vld [vmem:[%s1] sm:$0xff]
    %v404 = vld [vmem:[%s6] sm:$0x3]
    %406 = vset.pattern.permute.xlu0 0
    %407 = vperm.xlu0 %406, %v403
    %v408 = vpop.permute.xlu0 %407
    %v410 = vlaneseq
    %v411 = vshrl.u32 %v410, 7
    %v412 = vsub.s32 0, %v411
    %v413 = vrot.slane %v404, %v412
    %v414 = vmul.f32 %v408, %v413
    %415 = vset.pattern.permute.xlu0 1
    %416 = vperm.xlu0 %415, %v403
    %v417 = vpop.permute.xlu0 %416
    %v419 = vlaneseq
    %v420 = vshrl.u32 %v419, 7
    %v421 = vsub.s32 1, %v420
    %v422 = vrot.slane %v404, %v421
    %v423 = vmul.f32 %v417, %v422
    %v424 = vadd.f32 %v414, %v423
    %v425 = vld [vmem:[%s7] sm:$0x1]
    %v427 = vlaneseq
    %v428 = vshrl.u32 %v427, 7
    %v429 = vsub.s32 0, %v428
    %v430 = vrot.slane %v425, %v429
    %v432 = vadd.f32 %v424, %v430
    %v433 = vmax.f32 %v432, 0.0
    %v434 = vpack.c.bf16 %v401, %v401
    %v435 = vpack.c.bf16 %v402, %v402
    %v436 = vld [vmem:[#allocation5] sm:$0xf]
    %v437 = vld [vmem:[#allocation5 + $0x4] sm:$0xf]
    %v438 = vld [vmem:[#allocation5 + $0x8] sm:$0xf]
    %v439 = vld [vmem:[#allocation5 + $0xc] sm:$0xf]
    %v440 = vld [vmem:[#allocation5 + $0x10] sm:$0xf]
    %v441 = vld [vmem:[#allocation5 + $0x14] sm:$0xf]
    %v442 = vld [vmem:[#allocation5 + $0x18] sm:$0xf]
    %v443 = vld [vmem:[#allocation5 + $0x1c] sm:$0xf]
    %v444 = vld [vmem:[#allocation5 + $0x20] sm:$0xf]
    %v445 = vld [vmem:[#allocation5 + $0x24] sm:$0xf]
    %v446 = vld [vmem:[#allocation5 + $0x28] sm:$0xf]
    %v447 = vld [vmem:[#allocation5 + $0x2c] sm:$0xf]
    %v448 = vld [vmem:[#allocation5 + $0x30] sm:$0xf]
    %v449 = vld [vmem:[#allocation5 + $0x34] sm:$0xf]
    %v450 = vld [vmem:[#allocation5 + $0x38] sm:$0xf]
    %v451 = vld [vmem:[#allocation5 + $0x3c] sm:$0xf]
    %v452 = vld [vmem:[#allocation5 + $0x40] sm:$0xf]
    %v453 = vld [vmem:[#allocation5 + $0x44] sm:$0xf]
    %v454 = vld [vmem:[#allocation5 + $0x48] sm:$0xf]
    %v455 = vld [vmem:[#allocation5 + $0x4c] sm:$0xf]
    %v456 = vld [vmem:[#allocation5 + $0x50] sm:$0xf]
    %v457 = vld [vmem:[#allocation5 + $0x54] sm:$0xf]
    %v458 = vld [vmem:[#allocation5 + $0x58] sm:$0xf]
    %v459 = vld [vmem:[#allocation5 + $0x5c] sm:$0xf]
    %v460 = vld [vmem:[#allocation5 + $0x60] sm:$0xf]
    %v461 = vld [vmem:[#allocation5 + $0x64] sm:$0xf]
    %v462 = vld [vmem:[#allocation5 + $0x68] sm:$0xf]
    %v463 = vld [vmem:[#allocation5 + $0x6c] sm:$0xf]
    %v464 = vld [vmem:[#allocation5 + $0x70] sm:$0xf]
    %v465 = vld [vmem:[#allocation5 + $0x74] sm:$0xf]
    %v466 = vld [vmem:[#allocation5 + $0x78] sm:$0xf]
    %v467 = vld [vmem:[#allocation5 + $0x7c] sm:$0xf]
    %v468 = vpack.c.bf16 %v433, %v433
    %v469 = vld [vmem:[%s9] sm:$0xf]
    %v470 = vld [vmem:[%s9 + $0x4] sm:$0xf]
    %v471 = vld [vmem:[%s9 + $0x8] sm:$0xf]
    %v472 = vld [vmem:[%s9 + $0xc] sm:$0xf]
    %v473 = vld [vmem:[%s9 + $0x10] sm:$0xf]
    %v474 = vld [vmem:[%s9 + $0x14] sm:$0xf]
    %v475 = vld [vmem:[%s9 + $0x18] sm:$0xf]
    %v476 = vld [vmem:[%s9 + $0x1c] sm:$0xf]
    %v485 = vunpack.c.l.b16 %v469
    %v486 = vunpack.c.l.b16 %v470
    %v487 = vunpack.c.l.b16 %v471
    %v488 = vunpack.c.l.b16 %v472
    %v489 = vunpack.c.l.b16 %v473
    %v490 = vunpack.c.l.b16 %v474
    %v491 = vunpack.c.l.b16 %v475
    %v492 = vunpack.c.l.b16 %v476
    %v493 = vpack.c.b16 %v486, %v485
    %v494 = vpack.c.b16 %v488, %v487
    %v495 = vpack.c.b16 %v490, %v489
    %v496 = vpack.c.b16 %v492, %v491
    %vm501 = vcmask 523264
    %v503 = vsel %vm501, %v468, 0
    %505 = vmatprep.subr.bf16.mxu0 0
    %506 = vmatpush1.bf16.msra.mxu0 %v493
    %507 = vmatprep.subr.bf16.mxu0 0
    %508 = vmatpush1.bf16.msra.mxu0 %v494
    %509 = vmatprep.subr.bf16.mxu0 0
    %510 = vmatpush1.bf16.msra.mxu0 %v495
    %511 = vmatprep.subr.bf16.mxu0 0
    %512 = vmatpush1.bf16.msra.mxu0 %v496
    %513 = vmatprep.subr.bf16.mxu0 0
    %514 = vmatpush1.bf16.msra.mxu0 0
    %515 = vmatprep.subr.bf16.mxu0 0
    %516 = vmatpush1.bf16.msra.mxu0 0
    %517 = vmatprep.subr.bf16.mxu0 0
    %518 = vmatpush1.bf16.msra.mxu0 0
    %519 = vmatprep.subr.bf16.mxu0 0
    %520 = vmatpush1.bf16.msra.mxu0 0
    %521 = vmatprep.subr.bf16.mxu0 0
    %522 = vmatpush1.bf16.msra.mxu0 0
    %523 = vmatprep.subr.bf16.mxu0 0
    %524 = vmatpush1.bf16.msra.mxu0 0
    %525 = vmatprep.subr.bf16.mxu0 0
    %526 = vmatpush1.bf16.msra.mxu0 0
    %527 = vmatprep.subr.bf16.mxu0 0
    %528 = vmatpush1.bf16.msra.mxu0 0
    %529 = vmatprep.subr.bf16.mxu0 0
    %530 = vmatpush1.bf16.msra.mxu0 0
    %531 = vmatprep.subr.bf16.mxu0 0
    %532 = vmatpush1.bf16.msra.mxu0 0
    %533 = vmatprep.subr.bf16.mxu0 0
    %534 = vmatpush1.bf16.msra.mxu0 0
    %535 = vmatprep.subr.bf16.mxu0 0
    %536 = vmatpush1.bf16.msra.mxu0 0
    %537 = vmatprep.mubr.bf16.mxu0 0
    %538 = vmatmul.mubr.bf16.gmra.mrb[0].mxu0 %v503
    %v539 = vpop.f32.mrb[0].mxu0
    %v540 = vadd.f32 0.0, %v539
    %v541 = vpop.f32.mrb[0].mxu0
    %v542 = vpop.f32.mrb[0].mxu0
    %v543 = vpop.f32.mrb[0].mxu0
    %544 = vdwg.mxu0
    %v577 = vunpack.c.l.b16 %v436
    %v578 = vunpack.c.l.b16 %v437
    %v579 = vunpack.c.l.b16 %v438
    %v580 = vunpack.c.l.b16 %v439
    %v581 = vunpack.c.l.b16 %v440
    %v582 = vunpack.c.l.b16 %v441
    %v583 = vunpack.c.l.b16 %v442
    %v584 = vunpack.c.l.b16 %v443
    %v585 = vunpack.c.l.b16 %v444
    %v586 = vunpack.c.l.b16 %v445
    %v587 = vunpack.c.l.b16 %v446
    %v588 = vunpack.c.l.b16 %v447
    %v589 = vunpack.c.l.b16 %v448
    %v590 = vunpack.c.l.b16 %v449
    %v591 = vunpack.c.l.b16 %v450
    %v592 = vunpack.c.l.b16 %v451
    %v593 = vunpack.c.l.b16 %v452
    %v594 = vunpack.c.l.b16 %v453
    %v595 = vunpack.c.l.b16 %v454
    %v596 = vunpack.c.l.b16 %v455
    %v597 = vunpack.c.l.b16 %v456
    %v598 = vunpack.c.l.b16 %v457
    %v599 = vunpack.c.l.b16 %v458
    %v600 = vunpack.c.l.b16 %v459
    %v601 = vunpack.c.l.b16 %v460
    %v602 = vunpack.c.l.b16 %v461
    %v603 = vunpack.c.l.b16 %v462
    %v604 = vunpack.c.l.b16 %v463
    %v605 = vunpack.c.l.b16 %v464
    %v606 = vunpack.c.l.b16 %v465
    %v607 = vunpack.c.l.b16 %v466
    %v608 = vunpack.c.l.b16 %v467
    %v609 = vpack.c.b16 %v578, %v577
    %v610 = vpack.c.b16 %v580, %v579
    %v611 = vpack.c.b16 %v582, %v581
    %v612 = vpack.c.b16 %v584, %v583
    %v613 = vpack.c.b16 %v586, %v585
    %v614 = vpack.c.b16 %v588, %v587
    %v615 = vpack.c.b16 %v590, %v589
    %v616 = vpack.c.b16 %v592, %v591
    %v617 = vpack.c.b16 %v594, %v593
    %v618 = vpack.c.b16 %v596, %v595
    %v619 = vpack.c.b16 %v598, %v597
    %v620 = vpack.c.b16 %v600, %v599
    %v621 = vpack.c.b16 %v602, %v601
    %v622 = vpack.c.b16 %v604, %v603
    %v623 = vpack.c.b16 %v606, %v605
    %v624 = vpack.c.b16 %v608, %v607
    %641 = vmatprep.subr.bf16.mxu0 0
    %642 = vmatpush1.bf16.msra.mxu0 %v609
    %643 = vmatprep.subr.bf16.mxu0 0
    %644 = vmatpush1.bf16.msra.mxu0 %v610
    %645 = vmatprep.subr.bf16.mxu0 0
    %646 = vmatpush1.bf16.msra.mxu0 %v611
    %647 = vmatprep.subr.bf16.mxu0 0
    %648 = vmatpush1.bf16.msra.mxu0 %v612
    %649 = vmatprep.subr.bf16.mxu0 0
    %650 = vmatpush1.bf16.msra.mxu0 %v613
    %651 = vmatprep.subr.bf16.mxu0 0
    %652 = vmatpush1.bf16.msra.mxu0 %v614
    %653 = vmatprep.subr.bf16.mxu0 0
    %654 = vmatpush1.bf16.msra.mxu0 %v615
    %655 = vmatprep.subr.bf16.mxu0 0
    %656 = vmatpush1.bf16.msra.mxu0 %v616
    %657 = vmatprep.subr.bf16.mxu0 0
    %658 = vmatpush1.bf16.msra.mxu0 %v617
    %659 = vmatprep.subr.bf16.mxu0 0
    %660 = vmatpush1.bf16.msra.mxu0 %v618
    %661 = vmatprep.subr.bf16.mxu0 0
    %662 = vmatpush1.bf16.msra.mxu0 %v619
    %663 = vmatprep.subr.bf16.mxu0 0
    %664 = vmatpush1.bf16.msra.mxu0 %v620
    %665 = vmatprep.subr.bf16.mxu0 0
    %666 = vmatpush1.bf16.msra.mxu0 %v621
    %667 = vmatprep.subr.bf16.mxu0 0
    %668 = vmatpush1.bf16.msra.mxu0 %v622
    %669 = vmatprep.subr.bf16.mxu0 0
    %670 = vmatpush1.bf16.msra.mxu0 %v623
    %671 = vmatprep.subr.bf16.mxu0 0
    %672 = vmatpush1.bf16.msra.mxu0 %v624
    %673 = vmatprep.mubr.bf16.mxu0 %v435
    %674 = vmatmul.mubr.bf16.gmra.mrb[0].mxu0 %v434
    %v675 = vpop.f32.mrb[0].mxu0
    %v676 = vadd.f32 %v540, %v675
    %v677 = vpop.f32.mrb[0].mxu0
    %v678 = vpop.f32.mrb[0].mxu0
    %v679 = vpop.f32.mrb[0].mxu0
    %680 = vdwg.mxu0
    %v681 = vld [vmem:[%s10] sm:$0x1]
    %v683 = vlaneseq
    %v684 = vshrl.u32 %v683, 7
    %v685 = vsub.s32 0, %v684
    %v686 = vrot.slane %v681, %v685
    %v688 = vadd.f32 %v676, %v686
    %v689 = vmax.f32 %v688, 0.0
    %v690 = vpack.c.bf16 %v689, %v689
    %v691 = vld [vmem:[%s11] sm:$0xf]
    %v692 = vld [vmem:[%s11 + $0x4] sm:$0xf]
    %v693 = vld [vmem:[%s11 + $0x8] sm:$0xf]
    %v694 = vld [vmem:[%s11 + $0xc] sm:$0xf]
    %v695 = vld [vmem:[%s11 + $0x10] sm:$0xf]
    %v696 = vld [vmem:[%s11 + $0x14] sm:$0xf]
    %v697 = vld [vmem:[%s11 + $0x18] sm:$0xf]
    %v698 = vld [vmem:[%s11 + $0x1c] sm:$0xf]
    %v699 = vld [vmem:[%s11 + $0x20] sm:$0xf]
    %v700 = vld [vmem:[%s11 + $0x24] sm:$0xf]
    %v701 = vld [vmem:[%s11 + $0x28] sm:$0xf]
    %v702 = vld [vmem:[%s11 + $0x2c] sm:$0xf]
    %v703 = vld [vmem:[%s11 + $0x30] sm:$0xf]
    %v704 = vld [vmem:[%s11 + $0x34] sm:$0xf]
    %v705 = vld [vmem:[%s11 + $0x38] sm:$0xf]
    %v706 = vld [vmem:[%s11 + $0x3c] sm:$0xf]
    %v707 = vld [vmem:[%s12] sm:$0x1]
    %v709 = vlaneseq
    %v710 = vshrl.u32 %v709, 7
    %v711 = vsub.s32 0, %v710
    %v712 = vrot.slane %v707, %v711
    %v730 = vunpack.c.l.b16 %v691
    %v731 = vunpack.c.l.b16 %v692
    %v732 = vunpack.c.l.b16 %v693
    %v733 = vunpack.c.l.b16 %v694
    %v734 = vunpack.c.l.b16 %v695
    %v735 = vunpack.c.l.b16 %v696
    %v736 = vunpack.c.l.b16 %v697
    %v737 = vunpack.c.l.b16 %v698
    %v738 = vunpack.c.l.b16 %v699
    %v739 = vunpack.c.l.b16 %v700
    %v740 = vunpack.c.l.b16 %v701
    %v741 = vunpack.c.l.b16 %v702
    %v742 = vunpack.c.l.b16 %v703
    %v743 = vunpack.c.l.b16 %v704
    %v744 = vunpack.c.l.b16 %v705
    %v745 = vunpack.c.l.b16 %v706
    %v746 = vpack.c.b16 %v731, %v730
    %v747 = vpack.c.b16 %v733, %v732
    %v748 = vpack.c.b16 %v735, %v734
    %v749 = vpack.c.b16 %v737, %v736
    %v750 = vpack.c.b16 %v739, %v738
    %v751 = vpack.c.b16 %v741, %v740
    %v752 = vpack.c.b16 %v743, %v742
    %v753 = vpack.c.b16 %v745, %v744
    %762 = vmatprep.subr.bf16.mxu0 0
    %763 = vmatpush1.bf16.msra.mxu0 %v746
    %764 = vmatprep.subr.bf16.mxu0 0
    %765 = vmatpush1.bf16.msra.mxu0 %v747
    %766 = vmatprep.subr.bf16.mxu0 0
    %767 = vmatpush1.bf16.msra.mxu0 %v748
    %768 = vmatprep.subr.bf16.mxu0 0
    %769 = vmatpush1.bf16.msra.mxu0 %v749
    %770 = vmatprep.subr.bf16.mxu0 0
    %771 = vmatpush1.bf16.msra.mxu0 %v750
    %772 = vmatprep.subr.bf16.mxu0 0
    %773 = vmatpush1.bf16.msra.mxu0 %v751
    %774 = vmatprep.subr.bf16.mxu0 0
    %775 = vmatpush1.bf16.msra.mxu0 %v752
    %776 = vmatprep.subr.bf16.mxu0 0
    %777 = vmatpush1.bf16.msra.mxu0 %v753
    %778 = vmatprep.subr.bf16.mxu0 0
    %779 = vmatpush1.bf16.msra.mxu0 0
    %780 = vmatprep.subr.bf16.mxu0 0
    %781 = vmatpush1.bf16.msra.mxu0 0
    %782 = vmatprep.subr.bf16.mxu0 0
    %783 = vmatpush1.bf16.msra.mxu0 0
    %784 = vmatprep.subr.bf16.mxu0 0
    %785 = vmatpush1.bf16.msra.mxu0 0
    %786 = vmatprep.subr.bf16.mxu0 0
    %787 = vmatpush1.bf16.msra.mxu0 0
    %788 = vmatprep.subr.bf16.mxu0 0
    %789 = vmatpush1.bf16.msra.mxu0 0
    %790 = vmatprep.subr.bf16.mxu0 0
    %791 = vmatpush1.bf16.msra.mxu0 0
    %792 = vmatprep.subr.bf16.mxu0 0
    %793 = vmatpush1.bf16.msra.mxu0 0
    %794 = vmatprep.mubr.bf16.mxu0 0
    %795 = vmatmul.mubr.bf16.gmra.mrb[0].mxu0 %v690
    %v796 = vpop.f32.mrb[0].mxu0
    %v797 = vadd.f32 %v712, %v796
    %v798 = vpop.f32.mrb[0].mxu0
    %v799 = vpop.f32.mrb[0].mxu0
    %v800 = vpop.f32.mrb[0].mxu0
    %801 = vdwg.mxu0
    %v802 = vmax.f32 %v797, 0.0
    %v803 = vld [vmem:[%s13] sm:$0x1]
    %v805 = vlaneseq
    %v806 = vshrl.u32 %v805, 7
    %v807 = vsub.s32 0, %v806
    %v808 = vrot.slane %v803, %v807
    %v810 = vmul.f32 %v802, %v808
    %vm811 = vcmask 261120
    %v812 = vsel %vm811, %v810, 0.0
    %813 = vadd.xlane.f32.xlu0 %v812
    %v814 = vpop.xlane.xlu0 %813
    %v815 = vld [vmem:[#allocation2] sm:$0x1]
    %v817 = vlaneseq
    %v818 = vshrl.u32 %v817, 7
    %v819 = vsub.s32 0, %v818
    %v820 = vrot.slane %v815, %v819
    %v822 = vadd.f32 %v814, %v820
    %vm823 = vcmask 7168
    %824 = vst.msk [vmem:[%s15] sm:$0xff] %vm823, %v822
    // Predicated region
    $region70: #{tpu_custom_call.1} parent=1 // pred_check
      _
    $region71: #{tpu_custom_call.1} parent=1 // pred_check_branch
      %826 = sbr.rel (0) target = $region73
    $region72: #{tpu_custom_call.1} parent=1 // pred_region
      _
    $region73: #{tpu_custom_call.1} parent=1 // pred_fallthru
      _
    // Predicated region
    $region74: #{tpu_custom_call.1} parent=1 // pred_check
      _
    $region75: #{tpu_custom_call.1} parent=1 // pred_check_branch
      %828 = sbr.rel (0) target = $region77
    $region76: #{tpu_custom_call.1} parent=1 // pred_region
      _
    $region77: #{tpu_custom_call.1} parent=1 // pred_fallthru
      _
    %829 = vsyncpa [#allocation4], 1
    %830 = vsyncpa [#allocation6], 1

</llo_original>
